<compile_context>
chip_gen: v5e
topology: v5e:2x2
jax: 0.10.0
libtpu: 0.0.40
codegen_flags: <defaults>
</compile_context>

<pallas_src>
import functools

import jax
import jax.numpy as jnp
import numpy as np
from jax.experimental import pallas as pl
from jax.experimental.pallas import tpu as pltpu


# ----------------------------------------------------------------------------
# Helpers for tiling decisions (all trace-time Python ints).
# ----------------------------------------------------------------------------
def _round_up(x, m):
    return ((x + m - 1) // m) * m


def _largest_divisor_leq(n, cap):
    cap = max(1, min(int(cap), int(n)))
    for d in range(cap, 0, -1):
        if n % d == 0:
            return d
    return 1


def _choose_spatial_tile(m, max_tile):
    """Pick (num_tiles, tile_width): tile is a multiple of 128 lanes,
    <= max_tile, and num_tiles * tile >= m with < 128*num_tiles lanes of pad."""
    max_tile = max(128, (int(max_tile) // 128) * 128)
    nt = -(-m // max_tile)                     # ceil(m / max_tile)
    tn = _round_up(-(-m // nt), 128)           # ceil(m / nt) rounded to 128
    return nt, tn


def _choose_batch_fold(b, per_batch_bytes, nt, target_bytes=4 << 20,
                       cap_bytes=8 << 20, max_fold=64):
    """Fold several batches into one grid step when spatial tiling alone can't
    amortize the per-step pipeline overhead."""
    per_batch_bytes = max(int(per_batch_bytes), 1)
    desired = -(-target_bytes // per_batch_bytes)
    desired = min(desired, cap_bytes // per_batch_bytes, max_fold, b)
    desired = max(desired, 1)
    bt = _largest_divisor_leq(b, desired)
    # Keep at least two grid steps when possible so both TensorCores (v7x
    # megacore) can get work under the "parallel" dimension semantics.
    if nt * (b // bt) < 2 and b > 1:
        bt = _largest_divisor_leq(b, b // 2)
    return bt


# ----------------------------------------------------------------------------
# Pallas kernel: pointwise (1x1x1) Conv3d == W @ X over the channel axis,
# spatial flattened on the lane axis; Bt batches folded per grid step.
# ----------------------------------------------------------------------------
def _conv1x1_kernel(x_ref, w_ref, b_ref, o_ref):
    # x_ref: (Bt, C_in, TN)  w_ref: (C_out, C_in)  b_ref: (C_out, 1)
    # o_ref: (Bt, C_out, TN)
    w = w_ref[...]
    b = b_ref[...]
    for i in range(x_ref.shape[0]):           # small static unroll over Bt
        acc = jnp.dot(w, x_ref[i], preferred_element_type=jnp.float32)
        o_ref[i] = (acc + b).astype(o_ref.dtype)


def conv1x1_pallas(x_flat, weight, bias, *, max_tile=131072, io_dtype=None):
    """x_flat: (B, C_in, M); weight: (C_out, C_in); bias: (C_out,).

    Returns (B, C_out, M) in NCDHW-flattened layout.  `io_dtype=jnp.bfloat16`
    optionally halves HBM traffic (accumulation and bias add stay in f32).
    """
    B, cin, M = x_flat.shape
    cout = weight.shape[0]
    out_dtype = x_flat.dtype if io_dtype is None else jnp.dtype(io_dtype)
    if io_dtype is not None:
        x_flat = x_flat.astype(out_dtype)
        weight = weight.astype(out_dtype)
    bias2d = bias.reshape(cout, 1).astype(jnp.float32)   # bias add in f32

    # Spatial tiling: lane-dense tiles, pad M once so blocks divide evenly.
    nt, tn = _choose_spatial_tile(M, max_tile)
    m_pad = nt * tn
    if m_pad != M:
        x_flat = jnp.pad(x_flat, ((0, 0), (0, 0), (0, m_pad - M)))

    # Batch folding heuristic + explicit VMEM budget.
    in_itm = jnp.dtype(x_flat.dtype).itemsize
    out_itm = jnp.dtype(out_dtype).itemsize
    rcin = _round_up(cin, 8)
    rcout = _round_up(cout, 8)
    per_batch_bytes = tn * (in_itm * rcin + out_itm * rcout)
    bt = _choose_batch_fold(B, per_batch_bytes, nt)

    need_bytes = 2 * bt * per_batch_bytes + 2 * 4 * (rcout * rcin + rcout)
    vmem_limit = int(min(max(need_bytes + (8 << 20), 32 << 20), 48 << 20))

    y = pl.pallas_call(
        _conv1x1_kernel,
        out_shape=jax.ShapeDtypeStruct((B, cout, m_pad), out_dtype),
        grid_spec=pltpu.PrefetchScalarGridSpec(
            num_scalar_prefetch=0,
            grid=(B // bt, nt),
            in_specs=[
                pl.BlockSpec((bt, cin, tn), lambda g, j: (g, 0, j)),   # activations
                pl.BlockSpec((cout, cin), lambda g, j: (0, 0)),        # full weight
                pl.BlockSpec((cout, 1), lambda g, j: (0, 0)),          # full bias
            ],
            out_specs=pl.BlockSpec((bt, cout, tn), lambda g, j: (g, 0, j)),
        ),
        compiler_params=pltpu.CompilerParams(
            dimension_semantics=("parallel", "parallel"),
            vmem_limit_bytes=vmem_limit),
        cost_estimate=pl.CostEstimate(
            flops=2 * B * m_pad * cin * cout,
            transcendentals=0,
            bytes_accessed=(in_itm * B * m_pad * cin
                            + out_itm * B * m_pad * cout
                            + 4 * cin * cout + 4 * cout)),
    )(x_flat, weight, bias2d)

    if m_pad != M:
        y = y[..., :M]
    return y


# ----------------------------------------------------------------------------
# Spectral resize (plain JAX; matches torch.fft semantics, norm='forward').
# ----------------------------------------------------------------------------
def _spectral_resize(y, dim1, dim2, dim3):
    ft = jnp.fft.rfftn(y, axes=(-3, -2, -1), norm="forward")
    B, C, S1, S2, S3r = ft.shape
    d1 = min(S1 // 2, dim1 // 2)
    d2 = min(S2 // 2, dim2 // 2)
    d3 = max(min(S3r // 2, dim3 // 2), 1)
    D3r = dim3 // 2 + 1

    if d1 > 0 and d2 > 0:
        # One-pass construction of ft_u: keep low/high bands, zero-fill middle,
        # zero-pad the truncated last (rfft) axis.  Equivalent to the four
        # corner-copy scatter writes but without multiple full-tensor passes.
        fk = ft[..., :d3]
        z2 = jnp.zeros((B, C, S1, dim2 - 2 * d2, d3), ft.dtype)
        f2 = jnp.concatenate([fk[:, :, :, :d2, :], z2, fk[:, :, :, S2 - d2:, :]],
                             axis=3)
        z1 = jnp.zeros((B, C, dim1 - 2 * d1, dim2, d3), ft.dtype)
        f1 = jnp.concatenate([f2[:, :, :d1], z1, f2[:, :, S1 - d1:]], axis=2)
        ft_u = jnp.pad(f1, ((0, 0), (0, 0), (0, 0), (0, 0), (0, D3r - d3)))
    else:
        # Degenerate d1/d2 == 0: mirror PyTorch's Python slicing semantics
        # (a `-0:` slice grabs the whole axis).
        ft_u = jnp.zeros((B, C, dim1, dim2, D3r), dtype=ft.dtype)
        ft_u = ft_u.at[:, :, :d1, :d2, :d3].set(ft[:, :, :d1, :d2, :d3])
        ft_u = ft_u.at[:, :, -d1:, :d2, :d3].set(ft[:, :, -d1:, :d2, :d3])
        ft_u = ft_u.at[:, :, :d1, -d2:, :d3].set(ft[:, :, :d1, -d2:, :d3])
        ft_u = ft_u.at[:, :, -d1:, -d2:, :d3].set(ft[:, :, -d1:, -d2:, :d3])

    return jnp.fft.irfftn(ft_u, s=(dim1, dim2, dim3), norm="forward")


# ----------------------------------------------------------------------------
# Full module forward.
# ----------------------------------------------------------------------------
@functools.partial(jax.jit, static_argnames=("dim1", "dim2", "dim3"))
def modify_dimensions_3d(x, weight, bias, *, dim1, dim2, dim3):
    """Equivalent of ModifyDimensions3d.forward.

    x:      (B, C_in, S1, S2, S3) float32   (NCDHW, like PyTorch)
    weight: (C_out, C_in) float32           (squeezed Conv3d 1x1x1 weight)
    bias:   (C_out,) float32
    returns (B, C_out, dim1, dim2, dim3) float32
    """
    B, cin, S1, S2, S3 = x.shape
    cout = weight.shape[0]

    # --- 1x1x1 conv as Pallas matmul, directly in NCDHW layout ---------------
    x_flat = x.reshape(B, cin, S1 * S2 * S3)      # contiguous view, no transpose
    y_flat = conv1x1_pallas(x_flat, weight, bias)
    y = y_flat.reshape(B, cout, S1, S2, S3).astype(jnp.float32)

    # --- spectral resize ------------------------------------------------------
    return _spectral_resize(y, dim1, dim2, dim3).astype(jnp.float32)


if __name__ == "__main__":
    # Small, deterministic setup consistent with the module's forward.
    B, C_IN, C_OUT = 2, 4, 8
    S1 = S2 = S3 = 8
    DIM1 = DIM2 = DIM3 = 12

    key = jax.random.PRNGKey(0)
    kx, kw, kb = jax.random.split(key, 3)

    x = jax.random.normal(kx, (B, C_IN, S1, S2, S3), dtype=jnp.float32)
    # Conv3d(in, out, 1) weight has shape (out, in, 1, 1, 1); kept squeezed.
    weight = 0.1 * jax.random.normal(kw, (C_OUT, C_IN), dtype=jnp.float32)
    bias = 0.1 * jax.random.normal(kb, (C_OUT,), dtype=jnp.float32)

    out = modify_dimensions_3d(x, weight, bias, dim1=DIM1, dim2=DIM2, dim3=DIM3)
    out = jax.block_until_ready(out)
    assert out.shape == (B, C_OUT, DIM1, DIM2, DIM3), out.shape

    # Pallas conv vs. pure-JAX reference.
    x_flat = x.reshape(B, C_IN, S1 * S2 * S3)
    y_pallas = jax.block_until_ready(conv1x1_pallas(x_flat, weight, bias))
    y_ref = jnp.einsum("oc,bcm->bom", weight, x_flat) + bias[None, :, None]
    np.testing.assert_allclose(np.asarray(y_pallas), np.asarray(y_ref),
                               rtol=1e-5, atol=1e-5)

    # End-to-end vs. pure-JAX reference of the whole forward.
    out_ref = _spectral_resize(y_ref.reshape(B, C_OUT, S1, S2, S3),
                               DIM1, DIM2, DIM3)
    np.testing.assert_allclose(np.asarray(out), np.asarray(out_ref),
                               rtol=1e-4, atol=1e-4)

    print("KERNEL_OK")
</pallas_src>

<mosaic_0001>
module attributes {stable_mosaic.version = 11 : i64} {
  func.func @_conv1x1_kernel(%arg0: i32, %arg1: i32, %arg2: memref<1x4x512xf32, #tpu.memory_space<vmem>>, %arg3: memref<8x4xf32, #tpu.memory_space<vmem>>, %arg4: memref<8x1xf32, #tpu.memory_space<vmem>>, %arg5: memref<1x8x512xf32, #tpu.memory_space<vmem>>) attributes {dimension_semantics = [#tpu.dimension_semantics<parallel>, #tpu.dimension_semantics<parallel>], iteration_bounds = array<i64: 2, 1>, scalar_prefetch = 0 : i64, scratch_operands = 0 : i64, tpu.core_type = #tpu.core_type<tc>, window_params = [{transform_indices = @transform_0, window_bounds = array<i64: 1, 4, 512>}, {pipeline_mode = #tpu.pipeline_mode<synchronous>, transform_indices = @transform_1, window_bounds = array<i64: 8, 4>}, {pipeline_mode = #tpu.pipeline_mode<synchronous>, transform_indices = @transform_2, window_bounds = array<i64: 8, 1>}, {transform_indices = @transform_3, window_bounds = array<i64: 1, 8, 512>}]} {
    %c0 = arith.constant 0 : index
    %c0_0 = arith.constant 0 : index
    %0 = vector.load %arg3[%c0, %c0_0] : memref<8x4xf32, #tpu.memory_space<vmem>>, vector<8x4xf32>
    %c0_1 = arith.constant 0 : index
    %c0_2 = arith.constant 0 : index
    %1 = vector.load %arg4[%c0_1, %c0_2] : memref<8x1xf32, #tpu.memory_space<vmem>>, vector<8x1xf32>
    %c0_3 = arith.constant 0 : index
    %c0_4 = arith.constant 0 : index
    %c0_5 = arith.constant 0 : index
    %2 = vector.load %arg2[%c0_3, %c0_4, %c0_5] : memref<1x4x512xf32, #tpu.memory_space<vmem>>, vector<1x4x512xf32>
    %3 = vector.shape_cast %2 : vector<1x4x512xf32> to vector<4x512xf32>
    %cst = arith.constant dense<0.000000e+00> : vector<8x512xf32>
    %4 = tpu.matmul %0, %3, %cst {dimension_numbers = #tpu.dot_dimension_numbers<[1], [0], [0], [1], [0, 0, 1, 1], [], []>} : vector<8x4xf32>, vector<4x512xf32>, vector<8x512xf32> -> vector<8x512xf32>
    %5 = vector.broadcast %1 : vector<8x1xf32> to vector<8x512xf32>
    %6 = arith.addf %4, %5 : vector<8x512xf32>
    %c0_6 = arith.constant 0 : index
    %c0_7 = arith.constant 0 : index
    %c0_8 = arith.constant 0 : index
    %7 = vector.load %arg5[%c0_6, %c0_7, %c0_8] : memref<1x8x512xf32, #tpu.memory_space<vmem>>, vector<1x8x512xf32>
    %8 = vector.shape_cast %7 : vector<1x8x512xf32> to vector<8x512xf32>
    %9 = vector.shape_cast %6 : vector<8x512xf32> to vector<1x8x512xf32>
    tpu.vector_store %arg5[%c0_6, %c0_7, %c0_8], %9 {strides = array<i32>} : memref<1x8x512xf32, #tpu.memory_space<vmem>>, vector<1x8x512xf32>,
    return
  }
  func.func @transform_0(%arg0: i32, %arg1: i32) -> (i32, i32, i32) {
    %c0_i32 = arith.constant 0 : i32
    %c0_i32_0 = arith.constant 0 : i32
    return %arg0, %c0_i32, %arg1 : i32, i32, i32
  }
  func.func @transform_1(%arg0: i32, %arg1: i32) -> (i32, i32) {
    %c0_i32 = arith.constant 0 : i32
    %c0_i32_0 = arith.constant 0 : i32
    %c0_i32_1 = arith.constant 0 : i32
    return %c0_i32, %c0_i32_0 : i32, i32
  }
  func.func @transform_2(%arg0: i32, %arg1: i32) -> (i32, i32) {
    %c0_i32 = arith.constant 0 : i32
    %c0_i32_0 = arith.constant 0 : i32
    %c0_i32_1 = arith.constant 0 : i32
    return %c0_i32, %c0_i32_0 : i32, i32
  }
  func.func @transform_3(%arg0: i32, %arg1: i32) -> (i32, i32, i32) {
    %c0_i32 = arith.constant 0 : i32
    %c0_i32_0 = arith.constant 0 : i32
    return %arg0, %c0_i32, %arg1 : i32, i32, i32
  }
}

</mosaic_0001>

<llo_original>
// kernel: modify_dimensions_3d.1
$region0: #{modify_dimensions_3d.1}
  #allocation0 [shape = 'u32[]', space=smem, size = 0x4, offset = 0x4, fixed_abs, tag = 'smem constant byte address 0x4 - core index']
  #allocation1 [shape = 'u32[72,128]{1,0:T(1,128)}', space=vmem, size = 0x9000, scoped, tag = 'internal scratch']
  %s0 = inlined_call_operand.vmem [shape: f32[2,4,512], index: 0, kind: input, shape index: {}]
  %s1 = inlined_call_operand.vmem [shape: f32[8,4], index: 1, kind: input, shape index: {}]
  %s2 = inlined_call_operand.vmem [shape: f32[8,1], index: 2, kind: input, shape index: {}]
  %s3 = inlined_call_operand.vmem [shape: f32[2,8,512], index: 3, kind: output, shape index: {}]
  %s4 = sld [smem:[#allocation0]]
  $region45: #{modify_dimensions_3d.1} parent=0
    _
  %s6 = ssub.s32 1, %s4
  %s7 = scalar_select 0, %s6, %s4
  loop: start=0, step=1, limit=4
  $region2: #{modify_dimensions_3d.1} parent=0 // loop_pre_header
    _
  $region3: #{modify_dimensions_3d.1} parent=0 // loop_header
    %s9 = sphi 0, %s13
    %p10 = scmp.ge.s32.totalorder %s9, 4
    %s16 = sphi 0, %s28
    %s17 = sphi 0, %s24
    %s18 = sphi 0, %s16
    %s19 = sphi 0, %s17
    %s20 = sphi 0, %s18
    %s21 = sphi 0, %s19
    %s33 = sphi 0, %s35
    %s36 = sphi 0, %s33
    %s37 = sphi 0, %s36
    %s53 = sphi 0, %s37
    %s57 = sphi 0, %s57
    %s59 = sphi 0, %s57
    %s60 = sphi 0, %s59
    %s74 = sphi 0, %s60
    %s78 = sphi 0, %s78
    %s80 = sphi 0, %s78
    %s81 = sphi 0, %s80
    %s95 = sphi 0, %s81
    %s103 = sphi 0, %s105
    %s106 = sphi 0, %s103
    %s107 = sphi 0, %s106
    %s123 = sphi 0, %s107
  $region4: #{modify_dimensions_3d.1} parent=0 // loop_header_branch
    %12 = sbr.rel (%p10) target = $region8
  $region5: #{modify_dimensions_3d.1} parent=0 // loop_body
    %s14 = ssub.s32 %s9, 1
    %s15 = ssub.s32 %s9, 2
    %s22 = sadd.s32 1, %s17
    %p23 = scmp.ge.s32.totalorder %s22, 1
    %s24 = scalar_select %p23, 0, %s22
    %s25 = sadd.s32 1, %s16
    %s26 = scalar_select %p23, %s25, %s16
    %p27 = scmp.ge.s32.totalorder %s26, 2
    %s28 = scalar_select %p27, 0, %s26
    %s29 = ssub.s32 %s16, %s28
    %s30 = ssub.s32 %s17, %s24
    %s31 = sor.u32 %s29, %s30
    %p32 = scmp.eq.s32.totalorder %s31, 0
    %s34 = sadd.s32 %s33, 1
    %s35 = scalar_select %p32, %s33, %s34
    %p38 = pneg %p32
    %p39 = scmp.eq.s32.totalorder %s9, 1
    %p40 = por %p38, %p39
    %p41 = scmp.ne.s32.totalorder %s33, %s36
    %p42 = scmp.eq.s32.totalorder %s9, 0
    %p43 = por %p41, %p42
    %p44 = scmp.ne.s32.totalorder %s33, %s36
    %p45 = scmp.eq.s32.totalorder %s14, 1
    %p46 = por %p44, %p45
    %p47 = scmp.ne.s32.totalorder %s36, %s37
    %p48 = scmp.eq.s32.totalorder %s14, 0
    %p49 = por %p47, %p48
    %p50 = scmp.ne.s32.totalorder %s36, %s37
    %p51 = scmp.eq.s32.totalorder %s15, 1
    %p52 = por %p50, %p51
    %p54 = scmp.ne.s32.totalorder %s37, %s53
    %p55 = scmp.eq.s32.totalorder %s15, 0
    %p56 = por %p54, %p55
    %s58 = sadd.s32 %s57, 1
    %p61 = scmp.eq.s32.totalorder %s9, 1
    %p62 = scmp.ne.s32.totalorder %s57, %s59
    %p63 = scmp.eq.s32.totalorder %s9, 0
    %p64 = por %p62, %p63
    %p65 = scmp.ne.s32.totalorder %s57, %s59
    %p66 = scmp.eq.s32.totalorder %s14, 1
    %p67 = por %p65, %p66
    %p68 = scmp.ne.s32.totalorder %s59, %s60
    %p69 = scmp.eq.s32.totalorder %s14, 0
    %p70 = por %p68, %p69
    %p71 = scmp.ne.s32.totalorder %s59, %s60
    %p72 = scmp.eq.s32.totalorder %s15, 1
    %p73 = por %p71, %p72
    %p75 = scmp.ne.s32.totalorder %s60, %s74
    %p76 = scmp.eq.s32.totalorder %s15, 0
    %p77 = por %p75, %p76
    %s79 = sadd.s32 %s78, 1
    %p82 = scmp.eq.s32.totalorder %s9, 1
    %p83 = scmp.ne.s32.totalorder %s78, %s80
    %p84 = scmp.eq.s32.totalorder %s9, 0
    %p85 = por %p83, %p84
    %p86 = scmp.ne.s32.totalorder %s78, %s80
    %p87 = scmp.eq.s32.totalorder %s14, 1
    %p88 = por %p86, %p87
    %p89 = scmp.ne.s32.totalorder %s80, %s81
    %p90 = scmp.eq.s32.totalorder %s14, 0
    %p91 = por %p89, %p90
    %p92 = scmp.ne.s32.totalorder %s80, %s81
    %p93 = scmp.eq.s32.totalorder %s15, 1
    %p94 = por %p92, %p93
    %p96 = scmp.ne.s32.totalorder %s81, %s95
    %p97 = scmp.eq.s32.totalorder %s15, 0
    %p98 = por %p96, %p97
    %s99 = ssub.s32 %s16, %s28
    %s100 = ssub.s32 %s17, %s24
    %s101 = sor.u32 %s99, %s100
    %p102 = scmp.eq.s32.totalorder %s101, 0
    %s104 = sadd.s32 %s103, 1
    %s105 = scalar_select %p102, %s103, %s104
    %p108 = pneg %p102
    %p109 = scmp.eq.s32.totalorder %s9, 1
    %p110 = por %p108, %p109
    %p111 = scmp.ne.s32.totalorder %s103, %s106
    %p112 = scmp.eq.s32.totalorder %s9, 0
    %p113 = por %p111, %p112
    %p114 = scmp.ne.s32.totalorder %s103, %s106
    %p115 = scmp.eq.s32.totalorder %s14, 1
    %p116 = por %p114, %p115
    %p117 = scmp.ne.s32.totalorder %s106, %s107
    %p118 = scmp.eq.s32.totalorder %s14, 0
    %p119 = por %p117, %p118
    %p120 = scmp.ne.s32.totalorder %s106, %s107
    %p121 = scmp.eq.s32.totalorder %s15, 1
    %p122 = por %p120, %p121
    %p124 = scmp.ne.s32.totalorder %s107, %s123
    %p125 = scmp.eq.s32.totalorder %s15, 0
    %p126 = por %p124, %p125
    %p127 = scmp.le.s32.totalorder 1, %s9
    %p128 = scmp.lt.s32.totalorder %s9, 3
    %p129 = pnand %p127, %p128
    %p130 = pneg %p129
    // Predicated region
    $region9: #{modify_dimensions_3d.1} parent=5 // pred_check
      _
    $region10: #{modify_dimensions_3d.1} parent=5 // pred_check_branch
      %132 = sbr.rel (%p129) target = $region12
    $region11: #{modify_dimensions_3d.1} parent=5 // pred_region
      %s133 = ssub.s32 %s9, 1
      // Predicated region
      $region13: #{modify_dimensions_3d.1} parent=11 // pred_check
        %p134 = pneg %p70
      $region14: #{modify_dimensions_3d.1} parent=11 // pred_check_branch
        %136 = sbr.rel (%p134) target = $region16
      $region15: #{modify_dimensions_3d.1} parent=11 // pred_region
        _
      $region16: #{modify_dimensions_3d.1} parent=11 // pred_fallthru
        _
      // Predicated region
      $region17: #{modify_dimensions_3d.1} parent=11 // pred_check
        %p137 = pneg %p91
      $region18: #{modify_dimensions_3d.1} parent=11 // pred_check_branch
        %139 = sbr.rel (%p137) target = $region20
      $region19: #{modify_dimensions_3d.1} parent=11 // pred_region
        _
      $region20: #{modify_dimensions_3d.1} parent=11 // pred_fallthru
        _
    $region12: #{modify_dimensions_3d.1} parent=5 // pred_fallthru
      _
    %p140 = scmp.lt.s32.totalorder %s9, 2
    // Predicated region
    $region21: #{modify_dimensions_3d.1} parent=5 // pred_check
      %p141 = pneg %p140
    $region22: #{modify_dimensions_3d.1} parent=5 // pred_check_branch
      %143 = sbr.rel (%p141) target = $region24
    $region23: #{modify_dimensions_3d.1} parent=5 // pred_region
      // Predicated region
      $region25: #{modify_dimensions_3d.1} parent=23 // pred_check
        %p144 = pneg %p43
      $region26: #{modify_dimensions_3d.1} parent=23 // pred_check_branch
        %146 = sbr.rel (%p144) target = $region28
      $region27: #{modify_dimensions_3d.1} parent=23 // pred_region
        %s147 = smul.u32 4, %s17
        %p148 = scmp.lt.s32.totalorder %s16, 1
        %s149 = scalar_select %p148, %s16, 1
        %p150 = scmp.lt.s32.totalorder %s147, 3
        %s151 = scalar_select %p150, %s147, 3
        %s152 = smul.addr %s149, 4
        %s153 = sadd.s32 %s151, %s152
        %s154 = smul.addr %s153, 4
        %s155 = scalar_lea.vmem %s0, %s154
        %s156 = smul.u32 4, %s17
      $region28: #{modify_dimensions_3d.1} parent=23 // pred_fallthru
        _
    $region24: #{modify_dimensions_3d.1} parent=5 // pred_fallthru
      _
    %p157 = scmp.le.s32.totalorder 1, %s9
    %p158 = scmp.lt.s32.totalorder %s9, 3
    %p159 = pnand %p157, %p158
    %p160 = pneg %p159
    // Predicated region
    $region29: #{modify_dimensions_3d.1} parent=5 // pred_check
      _
    $region30: #{modify_dimensions_3d.1} parent=5 // pred_check_branch
      %162 = sbr.rel (%p159) target = $region32
    $region31: #{modify_dimensions_3d.1} parent=5 // pred_region
      %s163 = ssub.s32 %s9, 1
      %s164 = smul.u32 4, %s19
      %p165 = scmp.lt.s32.totalorder %s18, 1
      %s166 = scalar_select %p165, %s18, 1
      %p167 = scmp.lt.s32.totalorder %s164, 3
      %s168 = scalar_select %p167, %s164, 3
      %s169 = smul.addr %s166, 4
      %s170 = sadd.s32 %s168, %s169
      %s171 = smul.addr %s170, 4
      %s172 = scalar_lea.vmem %s0, %s171
      %p173 = pneg %p49
      %p174 = pneg %p46
      %p175 = pneg %p70
      %p176 = pneg %p67
      %p177 = pneg %p91
      %p178 = pneg %p88
      %p179 = pneg %p119
      %p180 = pneg %p116
      %s181 = smul.u32 4, %s19
      %p182 = scmp.lt.s32.totalorder %s18, 1
      %s183 = scalar_select %p182, %s18, 1
      %p184 = scmp.lt.s32.totalorder %s181, 3
      %s185 = scalar_select %p184, %s181, 3
      %s186 = smul.addr %s183, 4
      %s187 = sadd.s32 %s185, %s186
      %s188 = smul.addr %s187, 8
      %s189 = scalar_lea.vmem %s3, %s188
      %s190 = smul.u32 4, %s19
      %p191 = scmp.lt.s32.totalorder %s18, 1
      %s192 = scalar_select %p191, %s18, 1
      %p193 = scmp.lt.s32.totalorder %s190, 3
      %s194 = scalar_select %p193, %s190, 3
      %s195 = smul.addr %s192, 4
      %s196 = sadd.s32 %s194, %s195
      %s197 = smul.addr %s196, 4
      %s198 = scalar_lea.vmem %s0, %s197
      %s199 = smul.u32 4, %s19
      %s200 = smul.u32 4, %s19
      %p201 = scmp.lt.s32.totalorder %s18, 1
      %s202 = scalar_select %p201, %s18, 1
      %p203 = scmp.lt.s32.totalorder %s200, 3
      %s204 = scalar_select %p203, %s200, 3
      %s205 = smul.addr %s202, 4
      %s206 = sadd.s32 %s204, %s205
      %s207 = smul.addr %s206, 8
      %s208 = scalar_lea.vmem %s3, %s207
      %s209 = smul.u32 4, %s19
      %v210 = vld [vmem:[%s1] sm:$0xff]
      %v211 = vld [vmem:[%s2] sm:$0xff]
      %v212 = vld [vmem:[%s198] sm:$0xff]
      %v213 = vld [vmem:[%s198 + $0x8] sm:$0xff]
      %215 = vset.pattern.permute.xlu0 0
      %216 = vperm.xlu0 %215, %v211
      %v217 = vpop.permute.xlu0 %216
      %221 = vst [vmem:[#allocation1] ss:$2 sm:$0xff] %v212
      %s222 = scalar_lea.vmem [#allocation1], 16
      %223 = vst [vmem:[%s222] ss:$2 sm:$0xff] %v213
      %v224 = vld.sshfl [vmem:[#allocation1] sm:$0xff pattern:$0x75316420]
      %v225 = vld.sshfl [vmem:[#allocation1 + $0x8] sm:$0xff pattern:$0x75316420]
      %v226 = vld.sshfl [vmem:[#allocation1 + $0x10] sm:$0xff pattern:$0x75316420]
      %v227 = vld.sshfl [vmem:[#allocation1 + $0x18] sm:$0xff pattern:$0x75316420]
      %vm228 = vcmask 31744
      %v230 = vsel %vm228, %v210, 0
      %vm232 = vcmask 1043456
      %v233 = vsel %vm232, %v224, 0
      %v235 = vsel %vm232, %v225, 0
      %v237 = vsel %vm232, %v226, 0
      %v239 = vsel %vm232, %v227, 0
      %241 = vmatpush.msra.mxu0 0.0
      %242 = vmatpush.msra.mxu0 0.0
      %243 = vmatpush.msra.mxu0 0.0
      %244 = vmatpush.msra.mxu0 0.0
      %245 = vmatpush.msra.mxu0 0.0
      %246 = vmatpush.msra.mxu0 0.0
      %247 = vmatpush.msra.mxu0 0.0
      %248 = vmatpush.msra.mxu0 0.0
      %249 = vmatpush.msra.mxu0 0.0
      %250 = vmatpush.msra.mxu0 0.0
      %251 = vmatpush.msra.mxu0 0.0
      %252 = vmatpush.msra.mxu0 0.0
      %253 = vmatpush.msra.mxu0 0.0
      %254 = vmatpush.msra.mxu0 0.0
      %255 = vmatpush.msra.mxu0 0.0
      %256 = vmatpush.msra.mxu0 %v233
      %257 = vmatmul.f32.gmra.mxu0 %v230
      %v258 = vpop.f32.mrf.mxu0
      %v259 = vadd.f32 %v217, %v258
      %260 = vdwg.mxu0
      %261 = vmatpush.msra.mxu0 0.0
      %262 = vmatpush.msra.mxu0 0.0
      %263 = vmatpush.msra.mxu0 0.0
      %264 = vmatpush.msra.mxu0 0.0
      %265 = vmatpush.msra.mxu0 0.0
      %266 = vmatpush.msra.mxu0 0.0
      %267 = vmatpush.msra.mxu0 0.0
      %268 = vmatpush.msra.mxu0 0.0
      %269 = vmatpush.msra.mxu0 0.0
      %270 = vmatpush.msra.mxu0 0.0
      %271 = vmatpush.msra.mxu0 0.0
      %272 = vmatpush.msra.mxu0 0.0
      %273 = vmatpush.msra.mxu0 0.0
      %274 = vmatpush.msra.mxu0 0.0
      %275 = vmatpush.msra.mxu0 0.0
      %276 = vmatpush.msra.mxu0 %v235
      %277 = vmatmul.f32.gmra.mxu0 %v230
      %v278 = vpop.f32.mrf.mxu0
      %v279 = vadd.f32 %v217, %v278
      %280 = vdwg.mxu0
      %281 = vmatpush.msra.mxu0 0.0
      %282 = vmatpush.msra.mxu0 0.0
      %283 = vmatpush.msra.mxu0 0.0
      %284 = vmatpush.msra.mxu0 0.0
      %285 = vmatpush.msra.mxu0 0.0
      %286 = vmatpush.msra.mxu0 0.0
      %287 = vmatpush.msra.mxu0 0.0
      %288 = vmatpush.msra.mxu0 0.0
      %289 = vmatpush.msra.mxu0 0.0
      %290 = vmatpush.msra.mxu0 0.0
      %291 = vmatpush.msra.mxu0 0.0
      %292 = vmatpush.msra.mxu0 0.0
      %293 = vmatpush.msra.mxu0 0.0
      %294 = vmatpush.msra.mxu0 0.0
      %295 = vmatpush.msra.mxu0 0.0
      %296 = vmatpush.msra.mxu0 %v237
      %297 = vmatmul.f32.gmra.mxu0 %v230
      %v298 = vpop.f32.mrf.mxu0
      %v299 = vadd.f32 %v217, %v298
      %300 = vdwg.mxu0
      %301 = vmatpush.msra.mxu0 0.0
      %302 = vmatpush.msra.mxu0 0.0
      %303 = vmatpush.msra.mxu0 0.0
      %304 = vmatpush.msra.mxu0 0.0
      %305 = vmatpush.msra.mxu0 0.0
      %306 = vmatpush.msra.mxu0 0.0
      %307 = vmatpush.msra.mxu0 0.0
      %308 = vmatpush.msra.mxu0 0.0
      %309 = vmatpush.msra.mxu0 0.0
      %310 = vmatpush.msra.mxu0 0.0
      %311 = vmatpush.msra.mxu0 0.0
      %312 = vmatpush.msra.mxu0 0.0
      %313 = vmatpush.msra.mxu0 0.0
      %314 = vmatpush.msra.mxu0 0.0
      %315 = vmatpush.msra.mxu0 0.0
      %316 = vmatpush.msra.mxu0 %v239
      %317 = vmatmul.f32.gmra.mxu0 %v230
      %v318 = vpop.f32.mrf.mxu0
      %v319 = vadd.f32 %v217, %v318
      %320 = vdwg.mxu0
      %321 = vst [vmem:[%s208] sm:$0xff] %v259
      %322 = vst [vmem:[%s208 + $0x8] sm:$0xff] %v279
      %323 = vst [vmem:[%s208 + $0x10] sm:$0xff] %v299
      %324 = vst [vmem:[%s208 + $0x18] sm:$0xff] %v319
      %s325 = smul.u32 4, %s19
      %p326 = scmp.lt.s32.totalorder %s18, 1
      %s327 = scalar_select %p326, %s18, 1
      %p328 = scmp.lt.s32.totalorder %s325, 3
      %s329 = scalar_select %p328, %s325, 3
      %s330 = smul.addr %s327, 4
      %s331 = sadd.s32 %s329, %s330
      %s332 = smul.addr %s331, 8
      %s333 = scalar_lea.vmem %s3, %s332
      // Predicated region
      $region33: #{modify_dimensions_3d.1} parent=31 // pred_check
        %p334 = pneg %p116
      $region34: #{modify_dimensions_3d.1} parent=31 // pred_check_branch
        %336 = sbr.rel (%p334) target = $region36
      $region35: #{modify_dimensions_3d.1} parent=31 // pred_region
        %s337 = smul.u32 4, %s19
      $region36: #{modify_dimensions_3d.1} parent=31 // pred_fallthru
        _
    $region32: #{modify_dimensions_3d.1} parent=5 // pred_fallthru
      _
    %p338 = scmp.le.s32.totalorder 2, %s9
    // Predicated region
    $region37: #{modify_dimensions_3d.1} parent=5 // pred_check
      %p339 = pneg %p338
    $region38: #{modify_dimensions_3d.1} parent=5 // pred_check_branch
      %341 = sbr.rel (%p339) target = $region40
    $region39: #{modify_dimensions_3d.1} parent=5 // pred_region
      %s342 = ssub.s32 %s9, 2
      // Predicated region
      $region41: #{modify_dimensions_3d.1} parent=39 // pred_check
        %p343 = pneg %p122
      $region42: #{modify_dimensions_3d.1} parent=39 // pred_check_branch
        %345 = sbr.rel (%p343) target = $region44
      $region43: #{modify_dimensions_3d.1} parent=39 // pred_region
        %s346 = smul.u32 4, %s21
        %p347 = scmp.lt.s32.totalorder %s20, 1
        %s348 = scalar_select %p347, %s20, 1
        %p349 = scmp.lt.s32.totalorder %s346, 3
        %s350 = scalar_select %p349, %s346, 3
        %s351 = smul.addr %s348, 4
        %s352 = sadd.s32 %s350, %s351
        %s353 = smul.addr %s352, 8
        %s354 = scalar_lea.vmem %s3, %s353
      $region44: #{modify_dimensions_3d.1} parent=39 // pred_fallthru
        _
    $region40: #{modify_dimensions_3d.1} parent=5 // pred_fallthru
      _
  $region6: #{modify_dimensions_3d.1} parent=0 // loop_footer
    %s13 = sadd.s32 1, %s9
  $region7: #{modify_dimensions_3d.1} parent=0 // loop_footer_branch
    %8 = sbr.rel target = $region3
  $region8: #{modify_dimensions_3d.1} parent=0 // loop_exit
    _

// kernel: reverse.1
$region0: #{reverse.1}
  #allocation0 [shape = 's32[1]{0}', space=sflag, size = 0x4, scoped, tag = 'scoped memory for reverse.1']
  %s0 = inlined_call_operand.vmem [shape: f32[2,8,12,12,5], index: 0, kind: input, shape index: {}]
  %s1 = inlined_call_operand.vmem [shape: f32[2,8,12,12,5], index: 1, kind: output, shape index: {}]
  %s2 = scalar_lea.vmem %s0, 64
  %v3 = vld [vmem:[%s2] sm:$0xff]
  %4 = vst [vmem:[%s1] sm:$0xff] %v3
  %s5 = scalar_lea.vmem %s0, 704
  %v6 = vld [vmem:[%s5] sm:$0xff]
  %s7 = scalar_lea.vmem %s1, 640
  %8 = vst [vmem:[%s7] sm:$0xff] %v6
  %s9 = scalar_lea.vmem %s0, 144
  %v10 = vld [vmem:[%s9] sm:$0xff]
  %s11 = scalar_lea.vmem %s1, 80
  %12 = vst [vmem:[%s11] sm:$0xff] %v10
  %s13 = scalar_lea.vmem %s0, 784
  %v14 = vld [vmem:[%s13] sm:$0xff]
  %s15 = scalar_lea.vmem %s1, 720
  %16 = vst [vmem:[%s15] sm:$0xff] %v14
  %s17 = scalar_lea.vmem %s0, 224
  %v18 = vld [vmem:[%s17] sm:$0xff]
  %s19 = scalar_lea.vmem %s1, 160
  %20 = vst [vmem:[%s19] sm:$0xff] %v18
  %s21 = scalar_lea.vmem %s0, 864
  %v22 = vld [vmem:[%s21] sm:$0xff]
  %s23 = scalar_lea.vmem %s1, 800
  %24 = vst [vmem:[%s23] sm:$0xff] %v22
  %s25 = scalar_lea.vmem %s0, 304
  %v26 = vld [vmem:[%s25] sm:$0xff]
  %s27 = scalar_lea.vmem %s1, 240
  %28 = vst [vmem:[%s27] sm:$0xff] %v26
  %s29 = scalar_lea.vmem %s0, 944
  %v30 = vld [vmem:[%s29] sm:$0xff]
  %s31 = scalar_lea.vmem %s1, 880
  %32 = vst [vmem:[%s31] sm:$0xff] %v30
  %s33 = scalar_lea.vmem %s0, 384
  %v34 = vld [vmem:[%s33] sm:$0xff]
  %s35 = scalar_lea.vmem %s1, 320
  %36 = vst [vmem:[%s35] sm:$0xff] %v34
  %s37 = scalar_lea.vmem %s0, 1024
  %v38 = vld [vmem:[%s37] sm:$0xff]
  %s39 = scalar_lea.vmem %s1, 960
  %40 = vst [vmem:[%s39] sm:$0xff] %v38
  %s41 = scalar_lea.vmem %s0, 464
  %v42 = vld [vmem:[%s41] sm:$0xff]
  %s43 = scalar_lea.vmem %s1, 400
  %44 = vst [vmem:[%s43] sm:$0xff] %v42
  %s45 = scalar_lea.vmem %s0, 1104
  %v46 = vld [vmem:[%s45] sm:$0xff]
  %s47 = scalar_lea.vmem %s1, 1040
  %48 = vst [vmem:[%s47] sm:$0xff] %v46
  %s49 = scalar_lea.vmem %s0, 544
  %v50 = vld [vmem:[%s49] sm:$0xff]
  %s51 = scalar_lea.vmem %s1, 480
  %52 = vst [vmem:[%s51] sm:$0xff] %v50
  %s53 = scalar_lea.vmem %s0, 1184
  %v54 = vld [vmem:[%s53] sm:$0xff]
  %s55 = scalar_lea.vmem %s1, 1120
  %56 = vst [vmem:[%s55] sm:$0xff] %v54
  %s57 = scalar_lea.vmem %s0, 624
  %v58 = vld [vmem:[%s57] sm:$0xff]
  %s59 = scalar_lea.vmem %s1, 560
  %60 = vst [vmem:[%s59] sm:$0xff] %v58
  %s61 = scalar_lea.vmem %s0, 1264
  %v62 = vld [vmem:[%s61] sm:$0xff]
  %s63 = scalar_lea.vmem %s1, 1200
  %64 = vst [vmem:[%s63] sm:$0xff] %v62
  %s65 = scalar_lea.vmem %s0, 48
  %v66 = vld [vmem:[%s65] sm:$0xff]
  %s67 = scalar_lea.vmem %s1, 16
  %68 = vst [vmem:[%s67] sm:$0xff] %v66
  %s69 = scalar_lea.vmem %s0, 688
  %v70 = vld [vmem:[%s69] sm:$0xff]
  %s71 = scalar_lea.vmem %s1, 656
  %72 = vst [vmem:[%s71] sm:$0xff] %v70
  %s73 = scalar_lea.vmem %s0, 128
  %v74 = vld [vmem:[%s73] sm:$0xff]
  %s75 = scalar_lea.vmem %s1, 96
  %76 = vst [vmem:[%s75] sm:$0xff] %v74
  %s77 = scalar_lea.vmem %s0, 768
  %v78 = vld [vmem:[%s77] sm:$0xff]
  %s79 = scalar_lea.vmem %s1, 736
  %80 = vst [vmem:[%s79] sm:$0xff] %v78
  %s81 = scalar_lea.vmem %s0, 208
  %v82 = vld [vmem:[%s81] sm:$0xff]
  %s83 = scalar_lea.vmem %s1, 176
  %84 = vst [vmem:[%s83] sm:$0xff] %v82
  %s85 = scalar_lea.vmem %s0, 848
  %v86 = vld [vmem:[%s85] sm:$0xff]
  %s87 = scalar_lea.vmem %s1, 816
  %88 = vst [vmem:[%s87] sm:$0xff] %v86
  %s89 = scalar_lea.vmem %s0, 288
  %v90 = vld [vmem:[%s89] sm:$0xff]
  %s91 = scalar_lea.vmem %s1, 256
  %92 = vst [vmem:[%s91] sm:$0xff] %v90
  %s93 = scalar_lea.vmem %s0, 928
  %v94 = vld [vmem:[%s93] sm:$0xff]
  %s95 = scalar_lea.vmem %s1, 896
  %96 = vst [vmem:[%s95] sm:$0xff] %v94
  %s97 = scalar_lea.vmem %s0, 368
  %v98 = vld [vmem:[%s97] sm:$0xff]
  %s99 = scalar_lea.vmem %s1, 336
  %100 = vst [vmem:[%s99] sm:$0xff] %v98
  %s101 = scalar_lea.vmem %s0, 1008
  %v102 = vld [vmem:[%s101] sm:$0xff]
  %s103 = scalar_lea.vmem %s1, 976
  %104 = vst [vmem:[%s103] sm:$0xff] %v102
  %s105 = scalar_lea.vmem %s0, 448
  %v106 = vld [vmem:[%s105] sm:$0xff]
  %s107 = scalar_lea.vmem %s1, 416
  %108 = vst [vmem:[%s107] sm:$0xff] %v106
  %s109 = scalar_lea.vmem %s0, 1088
  %v110 = vld [vmem:[%s109] sm:$0xff]
  %s111 = scalar_lea.vmem %s1, 1056
  %112 = vst [vmem:[%s111] sm:$0xff] %v110
  %s113 = scalar_lea.vmem %s0, 528
  %v114 = vld [vmem:[%s113] sm:$0xff]
  %s115 = scalar_lea.vmem %s1, 496
  %116 = vst [vmem:[%s115] sm:$0xff] %v114
  %s117 = scalar_lea.vmem %s0, 1168
  %v118 = vld [vmem:[%s117] sm:$0xff]
  %s119 = scalar_lea.vmem %s1, 1136
  %120 = vst [vmem:[%s119] sm:$0xff] %v118
  %s121 = scalar_lea.vmem %s0, 608
  %v122 = vld [vmem:[%s121] sm:$0xff]
  %s123 = scalar_lea.vmem %s1, 576
  %124 = vst [vmem:[%s123] sm:$0xff] %v122
  %s125 = scalar_lea.vmem %s0, 1248
  %v126 = vld [vmem:[%s125] sm:$0xff]
  %s127 = scalar_lea.vmem %s1, 1216
  %128 = vst [vmem:[%s127] sm:$0xff] %v126
  %s129 = scalar_lea.vmem %s0, 32
  %v130 = vld [vmem:[%s129] sm:$0xff]
  %s131 = scalar_lea.vmem %s1, 32
  %132 = vst [vmem:[%s131] sm:$0xff] %v130
  %s133 = scalar_lea.vmem %s0, 672
  %v134 = vld [vmem:[%s133] sm:$0xff]
  %s135 = scalar_lea.vmem %s1, 672
  %136 = vst [vmem:[%s135] sm:$0xff] %v134
  %s137 = scalar_lea.vmem %s0, 112
  %v138 = vld [vmem:[%s137] sm:$0xff]
  %s139 = scalar_lea.vmem %s1, 112
  %140 = vst [vmem:[%s139] sm:$0xff] %v138
  %s141 = scalar_lea.vmem %s0, 752
  %v142 = vld [vmem:[%s141] sm:$0xff]
  %s143 = scalar_lea.vmem %s1, 752
  %144 = vst [vmem:[%s143] sm:$0xff] %v142
  %s145 = scalar_lea.vmem %s0, 192
  %v146 = vld [vmem:[%s145] sm:$0xff]
  %s147 = scalar_lea.vmem %s1, 192
  %148 = vst [vmem:[%s147] sm:$0xff] %v146
  %s149 = scalar_lea.vmem %s0, 832
  %v150 = vld [vmem:[%s149] sm:$0xff]
  %s151 = scalar_lea.vmem %s1, 832
  %152 = vst [vmem:[%s151] sm:$0xff] %v150
  %s153 = scalar_lea.vmem %s0, 272
  %v154 = vld [vmem:[%s153] sm:$0xff]
  %s155 = scalar_lea.vmem %s1, 272
  %156 = vst [vmem:[%s155] sm:$0xff] %v154
  %s157 = scalar_lea.vmem %s0, 912
  %v158 = vld [vmem:[%s157] sm:$0xff]
  %s159 = scalar_lea.vmem %s1, 912
  %160 = vst [vmem:[%s159] sm:$0xff] %v158
  %s161 = scalar_lea.vmem %s0, 352
  %v162 = vld [vmem:[%s161] sm:$0xff]
  %s163 = scalar_lea.vmem %s1, 352
  %164 = vst [vmem:[%s163] sm:$0xff] %v162
  %s165 = scalar_lea.vmem %s0, 992
  %v166 = vld [vmem:[%s165] sm:$0xff]
  %s167 = scalar_lea.vmem %s1, 992
  %168 = vst [vmem:[%s167] sm:$0xff] %v166
  %s169 = scalar_lea.vmem %s0, 432
  %v170 = vld [vmem:[%s169] sm:$0xff]
  %s171 = scalar_lea.vmem %s1, 432
  %172 = vst [vmem:[%s171] sm:$0xff] %v170
  %s173 = scalar_lea.vmem %s0, 1072
  %v174 = vld [vmem:[%s173] sm:$0xff]
  %s175 = scalar_lea.vmem %s1, 1072
  %176 = vst [vmem:[%s175] sm:$0xff] %v174
  %s177 = scalar_lea.vmem %s0, 512
  %v178 = vld [vmem:[%s177] sm:$0xff]
  %s179 = scalar_lea.vmem %s1, 512
  %180 = vst [vmem:[%s179] sm:$0xff] %v178
  %s181 = scalar_lea.vmem %s0, 1152
  %v182 = vld [vmem:[%s181] sm:$0xff]
  %s183 = scalar_lea.vmem %s1, 1152
  %184 = vst [vmem:[%s183] sm:$0xff] %v182
  %s185 = scalar_lea.vmem %s0, 592
  %v186 = vld [vmem:[%s185] sm:$0xff]
  %s187 = scalar_lea.vmem %s1, 592
  %188 = vst [vmem:[%s187] sm:$0xff] %v186
  %s189 = scalar_lea.vmem %s0, 1232
  %v190 = vld [vmem:[%s189] sm:$0xff]
  %s191 = scalar_lea.vmem %s1, 1232
  %192 = vst [vmem:[%s191] sm:$0xff] %v190
  %s193 = scalar_lea.vmem %s0, 16
  %v194 = vld [vmem:[%s193] sm:$0xff]
  %s195 = scalar_lea.vmem %s1, 48
  %196 = vst [vmem:[%s195] sm:$0xff] %v194
  %s197 = scalar_lea.vmem %s0, 656
  %v198 = vld [vmem:[%s197] sm:$0xff]
  %s199 = scalar_lea.vmem %s1, 688
  %200 = vst [vmem:[%s199] sm:$0xff] %v198
  %s201 = scalar_lea.vmem %s0, 96
  %v202 = vld [vmem:[%s201] sm:$0xff]
  %s203 = scalar_lea.vmem %s1, 128
  %204 = vst [vmem:[%s203] sm:$0xff] %v202
  %s205 = scalar_lea.vmem %s0, 736
  %v206 = vld [vmem:[%s205] sm:$0xff]
  %s207 = scalar_lea.vmem %s1, 768
  %208 = vst [vmem:[%s207] sm:$0xff] %v206
  %s209 = scalar_lea.vmem %s0, 176
  %v210 = vld [vmem:[%s209] sm:$0xff]
  %s211 = scalar_lea.vmem %s1, 208
  %212 = vst [vmem:[%s211] sm:$0xff] %v210
  %s213 = scalar_lea.vmem %s0, 816
  %v214 = vld [vmem:[%s213] sm:$0xff]
  %s215 = scalar_lea.vmem %s1, 848
  %216 = vst [vmem:[%s215] sm:$0xff] %v214
  %s217 = scalar_lea.vmem %s0, 256
  %v218 = vld [vmem:[%s217] sm:$0xff]
  %s219 = scalar_lea.vmem %s1, 288
  %220 = vst [vmem:[%s219] sm:$0xff] %v218
  %s221 = scalar_lea.vmem %s0, 896
  %v222 = vld [vmem:[%s221] sm:$0xff]
  %s223 = scalar_lea.vmem %s1, 928
  %224 = vst [vmem:[%s223] sm:$0xff] %v222
  %s225 = scalar_lea.vmem %s0, 336
  %v226 = vld [vmem:[%s225] sm:$0xff]
  %s227 = scalar_lea.vmem %s1, 368
  %228 = vst [vmem:[%s227] sm:$0xff] %v226
  %s229 = scalar_lea.vmem %s0, 976
  %v230 = vld [vmem:[%s229] sm:$0xff]
  %s231 = scalar_lea.vmem %s1, 1008
  %232 = vst [vmem:[%s231] sm:$0xff] %v230
  %s233 = scalar_lea.vmem %s0, 416
  %v234 = vld [vmem:[%s233] sm:$0xff]
  %s235 = scalar_lea.vmem %s1, 448
  %236 = vst [vmem:[%s235] sm:$0xff] %v234
  %s237 = scalar_lea.vmem %s0, 1056
  %v238 = vld [vmem:[%s237] sm:$0xff]
  %s239 = scalar_lea.vmem %s1, 1088
  %240 = vst [vmem:[%s239] sm:$0xff] %v238
  %s241 = scalar_lea.vmem %s0, 496
  %v242 = vld [vmem:[%s241] sm:$0xff]
  %s243 = scalar_lea.vmem %s1, 528
  %244 = vst [vmem:[%s243] sm:$0xff] %v242
  %s245 = scalar_lea.vmem %s0, 1136
  %v246 = vld [vmem:[%s245] sm:$0xff]
  %s247 = scalar_lea.vmem %s1, 1168
  %248 = vst [vmem:[%s247] sm:$0xff] %v246
  %s249 = scalar_lea.vmem %s0, 576
  %v250 = vld [vmem:[%s249] sm:$0xff]
  %s251 = scalar_lea.vmem %s1, 608
  %252 = vst [vmem:[%s251] sm:$0xff] %v250
  %s253 = scalar_lea.vmem %s0, 1216
  %v254 = vld [vmem:[%s253] sm:$0xff]
  %s255 = scalar_lea.vmem %s1, 1248
  %256 = vst [vmem:[%s255] sm:$0xff] %v254
  %v257 = vld [vmem:[%s0] sm:$0xff]
  %s258 = scalar_lea.vmem %s1, 64
  %259 = vst [vmem:[%s258] sm:$0xff] %v257
  %s260 = scalar_lea.vmem %s0, 640
  %v261 = vld [vmem:[%s260] sm:$0xff]
  %s262 = scalar_lea.vmem %s1, 704
  %263 = vst [vmem:[%s262] sm:$0xff] %v261
  %s264 = scalar_lea.vmem %s0, 80
  %v265 = vld [vmem:[%s264] sm:$0xff]
  %s266 = scalar_lea.vmem %s1, 144
  %267 = vst [vmem:[%s266] sm:$0xff] %v265
  %s268 = scalar_lea.vmem %s0, 720
  %v269 = vld [vmem:[%s268] sm:$0xff]
  %s270 = scalar_lea.vmem %s1, 784
  %271 = vst [vmem:[%s270] sm:$0xff] %v269
  %s272 = scalar_lea.vmem %s0, 160
  %v273 = vld [vmem:[%s272] sm:$0xff]
  %s274 = scalar_lea.vmem %s1, 224
  %275 = vst [vmem:[%s274] sm:$0xff] %v273
  %s276 = scalar_lea.vmem %s0, 800
  %v277 = vld [vmem:[%s276] sm:$0xff]
  %s278 = scalar_lea.vmem %s1, 864
  %279 = vst [vmem:[%s278] sm:$0xff] %v277
  %s280 = scalar_lea.vmem %s0, 240
  %v281 = vld [vmem:[%s280] sm:$0xff]
  %s282 = scalar_lea.vmem %s1, 304
  %283 = vst [vmem:[%s282] sm:$0xff] %v281
  %s284 = scalar_lea.vmem %s0, 880
  %v285 = vld [vmem:[%s284] sm:$0xff]
  %s286 = scalar_lea.vmem %s1, 944
  %287 = vst [vmem:[%s286] sm:$0xff] %v285
  %s288 = scalar_lea.vmem %s0, 320
  %v289 = vld [vmem:[%s288] sm:$0xff]
  %s290 = scalar_lea.vmem %s1, 384
  %291 = vst [vmem:[%s290] sm:$0xff] %v289
  %s292 = scalar_lea.vmem %s0, 960
  %v293 = vld [vmem:[%s292] sm:$0xff]
  %s294 = scalar_lea.vmem %s1, 1024
  %295 = vst [vmem:[%s294] sm:$0xff] %v293
  %s296 = scalar_lea.vmem %s0, 400
  %v297 = vld [vmem:[%s296] sm:$0xff]
  %s298 = scalar_lea.vmem %s1, 464
  %299 = vst [vmem:[%s298] sm:$0xff] %v297
  %s300 = scalar_lea.vmem %s0, 1040
  %v301 = vld [vmem:[%s300] sm:$0xff]
  %s302 = scalar_lea.vmem %s1, 1104
  %303 = vst [vmem:[%s302] sm:$0xff] %v301
  %s304 = scalar_lea.vmem %s0, 480
  %v305 = vld [vmem:[%s304] sm:$0xff]
  %s306 = scalar_lea.vmem %s1, 544
  %307 = vst [vmem:[%s306] sm:$0xff] %v305
  %s308 = scalar_lea.vmem %s0, 1120
  %v309 = vld [vmem:[%s308] sm:$0xff]
  %s310 = scalar_lea.vmem %s1, 1184
  %311 = vst [vmem:[%s310] sm:$0xff] %v309
  %s312 = scalar_lea.vmem %s0, 560
  %v313 = vld [vmem:[%s312] sm:$0xff]
  %s314 = scalar_lea.vmem %s1, 624
  %315 = vst [vmem:[%s314] sm:$0xff] %v313
  %s316 = scalar_lea.vmem %s0, 1200
  %v317 = vld [vmem:[%s316] sm:$0xff]
  %s318 = scalar_lea.vmem %s1, 1264
  %319 = vst [vmem:[%s318] sm:$0xff] %v317
  %s320 = scalar_lea.vmem %s0, 72
  %v321 = vld [vmem:[%s320] sm:$0xff]
  %s322 = scalar_lea.vmem %s1, 8
  %323 = vst [vmem:[%s322] sm:$0xff] %v321
  %s324 = scalar_lea.vmem %s0, 712
  %v325 = vld [vmem:[%s324] sm:$0xff]
  %s326 = scalar_lea.vmem %s1, 648
  %327 = vst [vmem:[%s326] sm:$0xff] %v325
  %s328 = scalar_lea.vmem %s0, 152
  %v329 = vld [vmem:[%s328] sm:$0xff]
  %s330 = scalar_lea.vmem %s1, 88
  %331 = vst [vmem:[%s330] sm:$0xff] %v329
  %s332 = scalar_lea.vmem %s0, 792
  %v333 = vld [vmem:[%s332] sm:$0xff]
  %s334 = scalar_lea.vmem %s1, 728
  %335 = vst [vmem:[%s334] sm:$0xff] %v333
  %s336 = scalar_lea.vmem %s0, 232
  %v337 = vld [vmem:[%s336] sm:$0xff]
  %s338 = scalar_lea.vmem %s1, 168
  %339 = vst [vmem:[%s338] sm:$0xff] %v337
  %s340 = scalar_lea.vmem %s0, 872
  %v341 = vld [vmem:[%s340] sm:$0xff]
  %s342 = scalar_lea.vmem %s1, 808
  %343 = vst [vmem:[%s342] sm:$0xff] %v341
  %s344 = scalar_lea.vmem %s0, 312
  %v345 = vld [vmem:[%s344] sm:$0xff]
  %s346 = scalar_lea.vmem %s1, 248
  %347 = vst [vmem:[%s346] sm:$0xff] %v345
  %s348 = scalar_lea.vmem %s0, 952
  %v349 = vld [vmem:[%s348] sm:$0xff]
  %s350 = scalar_lea.vmem %s1, 888
  %351 = vst [vmem:[%s350] sm:$0xff] %v349
  %s352 = scalar_lea.vmem %s0, 392
  %v353 = vld [vmem:[%s352] sm:$0xff]
  %s354 = scalar_lea.vmem %s1, 328
  %355 = vst [vmem:[%s354] sm:$0xff] %v353
  %s356 = scalar_lea.vmem %s0, 1032
  %v357 = vld [vmem:[%s356] sm:$0xff]
  %s358 = scalar_lea.vmem %s1, 968
  %359 = vst [vmem:[%s358] sm:$0xff] %v357
  %s360 = scalar_lea.vmem %s0, 472
  %v361 = vld [vmem:[%s360] sm:$0xff]
  %s362 = scalar_lea.vmem %s1, 408
  %363 = vst [vmem:[%s362] sm:$0xff] %v361
  %s364 = scalar_lea.vmem %s0, 1112
  %v365 = vld [vmem:[%s364] sm:$0xff]
  %s366 = scalar_lea.vmem %s1, 1048
  %367 = vst [vmem:[%s366] sm:$0xff] %v365
  %s368 = scalar_lea.vmem %s0, 552
  %v369 = vld [vmem:[%s368] sm:$0xff]
  %s370 = scalar_lea.vmem %s1, 488
  %371 = vst [vmem:[%s370] sm:$0xff] %v369
  %s372 = scalar_lea.vmem %s0, 1192
  %v373 = vld [vmem:[%s372] sm:$0xff]
  %s374 = scalar_lea.vmem %s1, 1128
  %375 = vst [vmem:[%s374] sm:$0xff] %v373
  %s376 = scalar_lea.vmem %s0, 632
  %v377 = vld [vmem:[%s376] sm:$0xff]
  %s378 = scalar_lea.vmem %s1, 568
  %379 = vst [vmem:[%s378] sm:$0xff] %v377
  %s380 = scalar_lea.vmem %s0, 1272
  %v381 = vld [vmem:[%s380] sm:$0xff]
  %s382 = scalar_lea.vmem %s1, 1208
  %383 = vst [vmem:[%s382] sm:$0xff] %v381
  %s384 = scalar_lea.vmem %s0, 56
  %v385 = vld [vmem:[%s384] sm:$0xff]
  %s386 = scalar_lea.vmem %s1, 24
  %387 = vst [vmem:[%s386] sm:$0xff] %v385
  %s388 = scalar_lea.vmem %s0, 696
  %v389 = vld [vmem:[%s388] sm:$0xff]
  %s390 = scalar_lea.vmem %s1, 664
  %391 = vst [vmem:[%s390] sm:$0xff] %v389
  %s392 = scalar_lea.vmem %s0, 136
  %v393 = vld [vmem:[%s392] sm:$0xff]
  %s394 = scalar_lea.vmem %s1, 104
  %395 = vst [vmem:[%s394] sm:$0xff] %v393
  %s396 = scalar_lea.vmem %s0, 776
  %v397 = vld [vmem:[%s396] sm:$0xff]
  %s398 = scalar_lea.vmem %s1, 744
  %399 = vst [vmem:[%s398] sm:$0xff] %v397
  %s400 = scalar_lea.vmem %s0, 216
  %v401 = vld [vmem:[%s400] sm:$0xff]
  %s402 = scalar_lea.vmem %s1, 184
  %403 = vst [vmem:[%s402] sm:$0xff] %v401
  %s404 = scalar_lea.vmem %s0, 856
  %v405 = vld [vmem:[%s404] sm:$0xff]
  %s406 = scalar_lea.vmem %s1, 824
  %407 = vst [vmem:[%s406] sm:$0xff] %v405
  %s408 = scalar_lea.vmem %s0, 296
  %v409 = vld [vmem:[%s408] sm:$0xff]
  %s410 = scalar_lea.vmem %s1, 264
  %411 = vst [vmem:[%s410] sm:$0xff] %v409
  %s412 = scalar_lea.vmem %s0, 936
  %v413 = vld [vmem:[%s412] sm:$0xff]
  %s414 = scalar_lea.vmem %s1, 904
  %415 = vst [vmem:[%s414] sm:$0xff] %v413
  %s416 = scalar_lea.vmem %s0, 376
  %v417 = vld [vmem:[%s416] sm:$0xff]
  %s418 = scalar_lea.vmem %s1, 344
  %419 = vst [vmem:[%s418] sm:$0xff] %v417
  %s420 = scalar_lea.vmem %s0, 1016
  %v421 = vld [vmem:[%s420] sm:$0xff]
  %s422 = scalar_lea.vmem %s1, 984
  %423 = vst [vmem:[%s422] sm:$0xff] %v421
  %s424 = scalar_lea.vmem %s0, 456
  %v425 = vld [vmem:[%s424] sm:$0xff]
  %s426 = scalar_lea.vmem %s1, 424
  %427 = vst [vmem:[%s426] sm:$0xff] %v425
  %s428 = scalar_lea.vmem %s0, 1096
  %v429 = vld [vmem:[%s428] sm:$0xff]
  %s430 = scalar_lea.vmem %s1, 1064
  %431 = vst [vmem:[%s430] sm:$0xff] %v429
  %s432 = scalar_lea.vmem %s0, 536
  %v433 = vld [vmem:[%s432] sm:$0xff]
  %s434 = scalar_lea.vmem %s1, 504
  %435 = vst [vmem:[%s434] sm:$0xff] %v433
  %s436 = scalar_lea.vmem %s0, 1176
  %v437 = vld [vmem:[%s436] sm:$0xff]
  %s438 = scalar_lea.vmem %s1, 1144
  %439 = vst [vmem:[%s438] sm:$0xff] %v437
  %s440 = scalar_lea.vmem %s0, 616
  %v441 = vld [vmem:[%s440] sm:$0xff]
  %s442 = scalar_lea.vmem %s1, 584
  %443 = vst [vmem:[%s442] sm:$0xff] %v441
  %s444 = scalar_lea.vmem %s0, 1256
  %v445 = vld [vmem:[%s444] sm:$0xff]
  %s446 = scalar_lea.vmem %s1, 1224
  %447 = vst [vmem:[%s446] sm:$0xff] %v445
  %s448 = scalar_lea.vmem %s0, 40
  %v449 = vld [vmem:[%s448] sm:$0xff]
  %s450 = scalar_lea.vmem %s1, 40
  %451 = vst [vmem:[%s450] sm:$0xff] %v449
  %s452 = scalar_lea.vmem %s0, 680
  %v453 = vld [vmem:[%s452] sm:$0xff]
  %s454 = scalar_lea.vmem %s1, 680
  %455 = vst [vmem:[%s454] sm:$0xff] %v453
  %s456 = scalar_lea.vmem %s0, 120
  %v457 = vld [vmem:[%s456] sm:$0xff]
  %s458 = scalar_lea.vmem %s1, 120
  %459 = vst [vmem:[%s458] sm:$0xff] %v457
  %s460 = scalar_lea.vmem %s0, 760
  %v461 = vld [vmem:[%s460] sm:$0xff]
  %s462 = scalar_lea.vmem %s1, 760
  %463 = vst [vmem:[%s462] sm:$0xff] %v461
  %s464 = scalar_lea.vmem %s0, 200
  %v465 = vld [vmem:[%s464] sm:$0xff]
  %s466 = scalar_lea.vmem %s1, 200
  %467 = vst [vmem:[%s466] sm:$0xff] %v465
  %s468 = scalar_lea.vmem %s0, 840
  %v469 = vld [vmem:[%s468] sm:$0xff]
  %s470 = scalar_lea.vmem %s1, 840
  %471 = vst [vmem:[%s470] sm:$0xff] %v469
  %s472 = scalar_lea.vmem %s0, 280
  %v473 = vld [vmem:[%s472] sm:$0xff]
  %s474 = scalar_lea.vmem %s1, 280
  %475 = vst [vmem:[%s474] sm:$0xff] %v473
  %s476 = scalar_lea.vmem %s0, 920
  %v477 = vld [vmem:[%s476] sm:$0xff]
  %s478 = scalar_lea.vmem %s1, 920
  %479 = vst [vmem:[%s478] sm:$0xff] %v477
  %s480 = scalar_lea.vmem %s0, 360
  %v481 = vld [vmem:[%s480] sm:$0xff]
  %s482 = scalar_lea.vmem %s1, 360
  %483 = vst [vmem:[%s482] sm:$0xff] %v481
  %s484 = scalar_lea.vmem %s0, 1000
  %v485 = vld [vmem:[%s484] sm:$0xff]
  %s486 = scalar_lea.vmem %s1, 1000
  %487 = vst [vmem:[%s486] sm:$0xff] %v485
  %s488 = scalar_lea.vmem %s0, 440
  %v489 = vld [vmem:[%s488] sm:$0xff]
  %s490 = scalar_lea.vmem %s1, 440
  %491 = vst [vmem:[%s490] sm:$0xff] %v489
  %s492 = scalar_lea.vmem %s0, 1080
  %v493 = vld [vmem:[%s492] sm:$0xff]
  %s494 = scalar_lea.vmem %s1, 1080
  %495 = vst [vmem:[%s494] sm:$0xff] %v493
  %s496 = scalar_lea.vmem %s0, 520
  %v497 = vld [vmem:[%s496] sm:$0xff]
  %s498 = scalar_lea.vmem %s1, 520
  %499 = vst [vmem:[%s498] sm:$0xff] %v497
  %s500 = scalar_lea.vmem %s0, 1160
  %v501 = vld [vmem:[%s500] sm:$0xff]
  %s502 = scalar_lea.vmem %s1, 1160
  %503 = vst [vmem:[%s502] sm:$0xff] %v501
  %s504 = scalar_lea.vmem %s0, 600
  %v505 = vld [vmem:[%s504] sm:$0xff]
  %s506 = scalar_lea.vmem %s1, 600
  %507 = vst [vmem:[%s506] sm:$0xff] %v505
  %s508 = scalar_lea.vmem %s0, 1240
  %v509 = vld [vmem:[%s508] sm:$0xff]
  %s510 = scalar_lea.vmem %s1, 1240
  %511 = vst [vmem:[%s510] sm:$0xff] %v509
  %s512 = scalar_lea.vmem %s0, 24
  %v513 = vld [vmem:[%s512] sm:$0xff]
  %s514 = scalar_lea.vmem %s1, 56
  %515 = vst [vmem:[%s514] sm:$0xff] %v513
  %s516 = scalar_lea.vmem %s0, 664
  %v517 = vld [vmem:[%s516] sm:$0xff]
  %s518 = scalar_lea.vmem %s1, 696
  %519 = vst [vmem:[%s518] sm:$0xff] %v517
  %s520 = scalar_lea.vmem %s0, 104
  %v521 = vld [vmem:[%s520] sm:$0xff]
  %s522 = scalar_lea.vmem %s1, 136
  %523 = vst [vmem:[%s522] sm:$0xff] %v521
  %s524 = scalar_lea.vmem %s0, 744
  %v525 = vld [vmem:[%s524] sm:$0xff]
  %s526 = scalar_lea.vmem %s1, 776
  %527 = vst [vmem:[%s526] sm:$0xff] %v525
  %s528 = scalar_lea.vmem %s0, 184
  %v529 = vld [vmem:[%s528] sm:$0xff]
  %s530 = scalar_lea.vmem %s1, 216
  %531 = vst [vmem:[%s530] sm:$0xff] %v529
  %s532 = scalar_lea.vmem %s0, 824
  %v533 = vld [vmem:[%s532] sm:$0xff]
  %s534 = scalar_lea.vmem %s1, 856
  %535 = vst [vmem:[%s534] sm:$0xff] %v533
  %s536 = scalar_lea.vmem %s0, 264
  %v537 = vld [vmem:[%s536] sm:$0xff]
  %s538 = scalar_lea.vmem %s1, 296
  %539 = vst [vmem:[%s538] sm:$0xff] %v537
  %s540 = scalar_lea.vmem %s0, 904
  %v541 = vld [vmem:[%s540] sm:$0xff]
  %s542 = scalar_lea.vmem %s1, 936
  %543 = vst [vmem:[%s542] sm:$0xff] %v541
  %s544 = scalar_lea.vmem %s0, 344
  %v545 = vld [vmem:[%s544] sm:$0xff]
  %s546 = scalar_lea.vmem %s1, 376
  %547 = vst [vmem:[%s546] sm:$0xff] %v545
  %s548 = scalar_lea.vmem %s0, 984
  %v549 = vld [vmem:[%s548] sm:$0xff]
  %s550 = scalar_lea.vmem %s1, 1016
  %551 = vst [vmem:[%s550] sm:$0xff] %v549
  %s552 = scalar_lea.vmem %s0, 424
  %v553 = vld [vmem:[%s552] sm:$0xff]
  %s554 = scalar_lea.vmem %s1, 456
  %555 = vst [vmem:[%s554] sm:$0xff] %v553
  %s556 = scalar_lea.vmem %s0, 1064
  %v557 = vld [vmem:[%s556] sm:$0xff]
  %s558 = scalar_lea.vmem %s1, 1096
  %559 = vst [vmem:[%s558] sm:$0xff] %v557
  %s560 = scalar_lea.vmem %s0, 504
  %v561 = vld [vmem:[%s560] sm:$0xff]
  %s562 = scalar_lea.vmem %s1, 536
  %563 = vst [vmem:[%s562] sm:$0xff] %v561
  %s564 = scalar_lea.vmem %s0, 1144
  %v565 = vld [vmem:[%s564] sm:$0xff]
  %s566 = scalar_lea.vmem %s1, 1176
  %567 = vst [vmem:[%s566] sm:$0xff] %v565
  %s568 = scalar_lea.vmem %s0, 584
  %v569 = vld [vmem:[%s568] sm:$0xff]
  %s570 = scalar_lea.vmem %s1, 616
  %571 = vst [vmem:[%s570] sm:$0xff] %v569
  %s572 = scalar_lea.vmem %s0, 1224
  %v573 = vld [vmem:[%s572] sm:$0xff]
  %s574 = scalar_lea.vmem %s1, 1256
  %575 = vst [vmem:[%s574] sm:$0xff] %v573
  %s576 = scalar_lea.vmem %s0, 8
  %v577 = vld [vmem:[%s576] sm:$0xff]
  %s578 = scalar_lea.vmem %s1, 72
  %579 = vst [vmem:[%s578] sm:$0xff] %v577
  %s580 = scalar_lea.vmem %s0, 648
  %v581 = vld [vmem:[%s580] sm:$0xff]
  %s582 = scalar_lea.vmem %s1, 712
  %583 = vst [vmem:[%s582] sm:$0xff] %v581
  %s584 = scalar_lea.vmem %s0, 88
  %v585 = vld [vmem:[%s584] sm:$0xff]
  %s586 = scalar_lea.vmem %s1, 152
  %587 = vst [vmem:[%s586] sm:$0xff] %v585
  %s588 = scalar_lea.vmem %s0, 728
  %v589 = vld [vmem:[%s588] sm:$0xff]
  %s590 = scalar_lea.vmem %s1, 792
  %591 = vst [vmem:[%s590] sm:$0xff] %v589
  %s592 = scalar_lea.vmem %s0, 168
  %v593 = vld [vmem:[%s592] sm:$0xff]
  %s594 = scalar_lea.vmem %s1, 232
  %595 = vst [vmem:[%s594] sm:$0xff] %v593
  %s596 = scalar_lea.vmem %s0, 808
  %v597 = vld [vmem:[%s596] sm:$0xff]
  %s598 = scalar_lea.vmem %s1, 872
  %599 = vst [vmem:[%s598] sm:$0xff] %v597
  %s600 = scalar_lea.vmem %s0, 248
  %v601 = vld [vmem:[%s600] sm:$0xff]
  %s602 = scalar_lea.vmem %s1, 312
  %603 = vst [vmem:[%s602] sm:$0xff] %v601
  %s604 = scalar_lea.vmem %s0, 888
  %v605 = vld [vmem:[%s604] sm:$0xff]
  %s606 = scalar_lea.vmem %s1, 952
  %607 = vst [vmem:[%s606] sm:$0xff] %v605
  %s608 = scalar_lea.vmem %s0, 328
  %v609 = vld [vmem:[%s608] sm:$0xff]
  %s610 = scalar_lea.vmem %s1, 392
  %611 = vst [vmem:[%s610] sm:$0xff] %v609
  %s612 = scalar_lea.vmem %s0, 968
  %v613 = vld [vmem:[%s612] sm:$0xff]
  %s614 = scalar_lea.vmem %s1, 1032
  %615 = vst [vmem:[%s614] sm:$0xff] %v613
  %s616 = scalar_lea.vmem %s0, 408
  %v617 = vld [vmem:[%s616] sm:$0xff]
  %s618 = scalar_lea.vmem %s1, 472
  %619 = vst [vmem:[%s618] sm:$0xff] %v617
  %s620 = scalar_lea.vmem %s0, 1048
  %v621 = vld [vmem:[%s620] sm:$0xff]
  %s622 = scalar_lea.vmem %s1, 1112
  %623 = vst [vmem:[%s622] sm:$0xff] %v621
  %s624 = scalar_lea.vmem %s0, 488
  %v625 = vld [vmem:[%s624] sm:$0xff]
  %s626 = scalar_lea.vmem %s1, 552
  %627 = vst [vmem:[%s626] sm:$0xff] %v625
  %s628 = scalar_lea.vmem %s0, 1128
  %v629 = vld [vmem:[%s628] sm:$0xff]
  %s630 = scalar_lea.vmem %s1, 1192
  %631 = vst [vmem:[%s630] sm:$0xff] %v629
  %s632 = scalar_lea.vmem %s0, 568
  %v633 = vld [vmem:[%s632] sm:$0xff]
  %s634 = scalar_lea.vmem %s1, 632
  %635 = vst [vmem:[%s634] sm:$0xff] %v633
  %s636 = scalar_lea.vmem %s0, 1208
  %v637 = vld [vmem:[%s636] sm:$0xff]
  %s638 = scalar_lea.vmem %s1, 1272
  %639 = vst [vmem:[%s638] sm:$0xff] %v637

</llo_original>
